<compile_context>
chip_gen: v7x
topology: tpu7x:2x2x1
jax: 0.10.0
libtpu: 0.0.40
codegen_flags: <defaults>
</compile_context>

<pallas_src>
import functools

import jax
import jax.numpy as jnp
from jax.experimental import pallas as pl
from jax.experimental.pallas import tpu as pltpu

LANE = 128                       # lane width; output last dim padded to a multiple
TM_MAX = 1024                    # dst-row tile (agg)
TK_MAX = 1024                    # src / reduction tile (agg)
TS_MAX = 1024                    # row tile for the Wh kernel
WH_RESIDENT_BYTES = 8 * 1024 * 1024   # keep Wh fully VMEM-resident below this
VMEM_LIMIT_BYTES = 40 * 1024 * 1024   # explicit scoped-VMEM limit (v5e default is 16 MiB)


def _round_up(x, m):
    return ((x + m - 1) // m) * m


# ---------------------------------------------------------------------------
# Kernel 1: per-etype linear transform  Wh = X @ W + b   (bf16 in, bf16 out)
# ---------------------------------------------------------------------------
def _wh_kernel(x_ref, w_ref, b_ref, o_ref):
    xw = jnp.dot(x_ref[...], w_ref[...], preferred_element_type=jnp.float32)
    o_ref[...] = (xw + b_ref[...]).astype(o_ref.dtype)


@jax.jit
def wh_forward(x_bf16, w_bf16, b_f32):
    """[N_src_pad, D_in]bf16 @ [D_in, D_out_pad]bf16 + b -> bf16 [N_src_pad, D_out_pad]."""
    n_src_pad, d_in = x_bf16.shape
    d_out_pad = w_bf16.shape[1]
    ts = min(TS_MAX, n_src_pad)            # n_src_pad is a multiple of ts by construction
    return pl.pallas_call(
        _wh_kernel,
        out_shape=jax.ShapeDtypeStruct((n_src_pad, d_out_pad), jnp.bfloat16),
        grid=(n_src_pad // ts,),
        in_specs=[
            pl.BlockSpec((ts, d_in), lambda i: (i, 0)),
            pl.BlockSpec((d_in, d_out_pad), lambda i: (0, 0)),
            pl.BlockSpec((1, d_out_pad), lambda i: (0, 0)),
        ],
        out_specs=pl.BlockSpec((ts, d_out_pad), lambda i: (i, 0)),
        compiler_params=pltpu.CompilerParams(dimension_semantics=("parallel",)),
    )(x_bf16, w_bf16, b_f32)


# ---------------------------------------------------------------------------
# Kernel 2: mean aggregation + fused cross-etype 'sum'
#           out = [prev +] inv_deg * (mask @ Wh)
# ---------------------------------------------------------------------------
def _make_agg_kernel(tk, has_prev, wh_resident):
    def kernel(a_ref, wh_ref, inv_ref, *rest):
        if has_prev:
            prev_ref, o_ref = rest
        else:
            (o_ref,) = rest

        k = pl.program_id(1)

        @pl.when(k == 0)
        def _():
            o_ref[...] = jnp.zeros_like(o_ref)

        a = a_ref[...].astype(jnp.bfloat16)          # 0/1 mask: exact in bf16
        if wh_resident:
            start = pl.multiple_of(k * tk, tk)
            wh = wh_ref[pl.ds(start, tk), :]         # single-DMA Wh, sliced per k
        else:
            wh = wh_ref[...]
        o_ref[...] += jnp.dot(a, wh, preferred_element_type=jnp.float32)

        @pl.when(k == pl.num_programs(1) - 1)
        def _():
            res = inv_ref[...] * o_ref[...]          # per-dst-row mean (VPU, epilogue)
            if has_prev:
                res = res + prev_ref[...]            # fused cross-etype 'sum'
            o_ref[...] = res

    return kernel


def _agg_call(a_mask, wh, inv_deg, prev):
    n_dst_pad, n_src_pad = a_mask.shape
    d_out_pad = wh.shape[1]
    has_prev = prev is not None

    tm = min(TM_MAX, n_dst_pad)
    # v7x megacore: make sure the 'parallel' dst axis has >= 2 tiles when possible
    # (keep tm a multiple of 32 for the int8 mask tiling).
    if n_dst_pad // tm == 1 and tm % 64 == 0:
        tm //= 2
    tk = min(TK_MAX, n_src_pad)
    grid = (n_dst_pad // tm, n_src_pad // tk)

    wh_resident = n_src_pad * d_out_pad * 2 <= WH_RESIDENT_BYTES
    if wh_resident:
        wh_spec = pl.BlockSpec((n_src_pad, d_out_pad), lambda i, k: (0, 0))
    else:
        wh_spec = pl.BlockSpec((tk, d_out_pad), lambda i, k: (k, 0))

    in_specs = [
        pl.BlockSpec((tm, tk), lambda i, k: (i, k)),     # int8 0/1 mask
        wh_spec,                                         # bf16 Wh
        pl.BlockSpec((tm, 1), lambda i, k: (i, 0)),      # f32 inv_degree column
    ]
    inputs = [a_mask, wh, inv_deg]
    io_aliases = {}
    if has_prev:
        in_specs.append(pl.BlockSpec((tm, d_out_pad), lambda i, k: (i, 0)))
        inputs.append(prev)
        io_aliases = {3: 0}                              # in-place cross-etype sum

    flops = 2 * n_dst_pad * n_src_pad * d_out_pad
    wh_bytes = n_src_pad * d_out_pad * 2
    bytes_accessed = (
        n_dst_pad * n_src_pad                                   # int8 mask, read once
        + (wh_bytes if wh_resident else grid[0] * wh_bytes)     # Wh
        + n_dst_pad * 4                                         # inv_degree
        + (2 if has_prev else 1) * n_dst_pad * d_out_pad * 4    # out (+ prev read)
    )

    return pl.pallas_call(
        _make_agg_kernel(tk, has_prev, wh_resident),
        out_shape=jax.ShapeDtypeStruct((n_dst_pad, d_out_pad), jnp.float32),
        grid=grid,
        in_specs=in_specs,
        out_specs=pl.BlockSpec((tm, d_out_pad), lambda i, k: (i, 0)),
        input_output_aliases=io_aliases,
        compiler_params=pltpu.CompilerParams(
            dimension_semantics=("parallel", "arbitrary"),
            vmem_limit_bytes=VMEM_LIMIT_BYTES),
        cost_estimate=pl.CostEstimate(
            flops=flops, transcendentals=0, bytes_accessed=bytes_accessed),
    )(*inputs)


@jax.jit
def agg_first(a_mask, wh, inv_deg):
    """First etype of a dst type: out = inv_deg * (mask @ Wh) — no prev read."""
    return _agg_call(a_mask, wh, inv_deg, None)


@functools.partial(jax.jit, donate_argnums=(3,))
def agg_next(a_mask, wh, inv_deg, prev):
    """Subsequent etypes: out = prev + inv_deg * (mask @ Wh), prev aliased in place."""
    return _agg_call(a_mask, wh, inv_deg, prev)


# ---------------------------------------------------------------------------
# Graph preprocessing (done ONCE, outside the per-layer forward)
# ---------------------------------------------------------------------------
def build_graph(canonical_etypes, adjacency_mask, n_nodes):
    """Preprocess the hetero-graph into kernel-ready padded arrays.

    adjacency_mask[(src, e, dst)]: [n_dst, n_src] 0/1 incidence (f32/bool).
    Produces, per etype, a padded int8 0/1 mask and a padded f32 inv_degree
    column (0 for zero-in-degree nodes -> DGL mean default of 0).
    """
    dst_pad = {nt: _round_up(n, min(TM_MAX, _round_up(n, 32)))
               for nt, n in n_nodes.items()}
    src_pad = {nt: _round_up(n, min(TK_MAX, _round_up(n, LANE)))
               for nt, n in n_nodes.items()}

    masks, inv_degs = {}, {}
    for et in canonical_etypes:
        srctype, _, dsttype = et
        adj = jnp.asarray(adjacency_mask[et], jnp.float32)
        n_dst, n_src = adj.shape
        deg = jnp.sum(adj, axis=1, keepdims=True)
        inv = jnp.where(deg > 0, 1.0 / jnp.maximum(deg, 1.0), 0.0)
        masks[et] = jnp.pad(adj.astype(jnp.int8),
                            ((0, dst_pad[dsttype] - n_dst),
                             (0, src_pad[srctype] - n_src)))
        inv_degs[et] = jnp.pad(inv, ((0, dst_pad[dsttype] - n_dst), (0, 0)))

    return dict(canonical_etypes=list(canonical_etypes), n_nodes=dict(n_nodes),
                dst_pad=dst_pad, src_pad=src_pad, mask=masks, inv_deg=inv_degs)


# ---------------------------------------------------------------------------
# Full layer forward
# ---------------------------------------------------------------------------
def hetero_rgcn_layer_forward(graph, feat_dict, params, out_size):
    d_out_pad = _round_up(out_size, LANE)
    n_nodes = graph["n_nodes"]
    src_pad = graph["src_pad"]

    # Hoisted per-srctype padding + bf16 cast (once per node type, not per etype).
    x_pad = {nt: jnp.pad(feat_dict[nt].astype(jnp.bfloat16),
                         ((0, src_pad[nt] - n_nodes[nt]), (0, 0)))
             for nt in feat_dict}

    acc = {}
    for et in graph["canonical_etypes"]:
        srctype, etype, dsttype = et
        edge_key = "_".join(et)
        w, b = params[edge_key]

        # Lane-dense padding of the (tiny) per-etype linear params.
        w_pad = jnp.pad(w, ((0, 0), (0, d_out_pad - out_size))).astype(jnp.bfloat16)
        b_pad = jnp.pad(b, ((0, 0), (0, d_out_pad - out_size)))

        # Kernel 1: Wh = X @ W + b   (computed once per etype; bf16 output).
        wh = wh_forward(x_pad[srctype], w_pad, b_pad)

        # Kernel 2: per-dst mean over in-edges, fused with cross-etype 'sum'.
        mask = graph["mask"][et]
        inv_deg = graph["inv_deg"][et]
        if dsttype not in acc:
            acc[dsttype] = agg_first(mask, wh, inv_deg)
        else:
            acc[dsttype] = agg_next(mask, wh, inv_deg, acc[dsttype])

    # Strip padding.
    return {nt: acc[nt][:n_nodes[nt], :out_size] for nt in acc}


# ---------------------------------------------------------------------------
# Deterministic synthetic hetero-graph + parameter construction (glue).
# ---------------------------------------------------------------------------
def _linear_params(key, in_dim, out_dim):
    """Deterministic nn.Linear-style init: U(-1/sqrt(in), 1/sqrt(in))."""
    kw, kb = jax.random.split(key)
    bound = 1.0 / jnp.sqrt(jnp.float32(in_dim))
    w = jax.random.uniform(kw, (in_dim, out_dim), jnp.float32, -bound, bound)
    b = jax.random.uniform(kb, (1, out_dim), jnp.float32, -bound, bound)
    return w, b


def _random_binary_adjacency(key, n_dst, n_src, p=0.35):
    """Dense 0/1 incidence matrix (dst rows, src cols)."""
    return (jax.random.uniform(key, (n_dst, n_src)) < p).astype(jnp.float32)


if __name__ == "__main__":
    key = jax.random.PRNGKey(0)

    n_nodes = {"user": 8, "item": 16}
    feat_dims = {"user": 16, "item": 32}
    out_size = 32

    canonical_etypes = [
        ("user", "follows", "user"),
        ("user", "buys", "item"),
        ("item", "bought_by", "user"),
    ]
    # etypes_dim_map: canonical etype -> in_dim (source-type feature dim)
    etypes_dim_map = {et: feat_dims[et[0]] for et in canonical_etypes}

    keys = jax.random.split(key, 16)
    feat_dict = {
        "user": jax.random.normal(keys[0], (n_nodes["user"], feat_dims["user"]), jnp.float32),
        "item": jax.random.normal(keys[1], (n_nodes["item"], feat_dims["item"]), jnp.float32),
    }

    params = {}
    adjacency = {}
    for i, et in enumerate(canonical_etypes):
        srctype, etype, dsttype = et
        params["_".join(et)] = _linear_params(keys[2 + i], etypes_dim_map[et], out_size)
        adjacency[et] = _random_binary_adjacency(
            keys[8 + i], n_nodes[dsttype], n_nodes[srctype])

    # Preprocess the graph ONCE (padded int8 masks + f32 inv_degrees).
    graph = build_graph(canonical_etypes, adjacency, n_nodes)

    # Run the Pallas-backed layer.
    out = hetero_rgcn_layer_forward(graph, feat_dict, params, out_size)
    out = {k: jax.block_until_ready(v) for k, v in out.items()}

    # Pure-JAX f32 reference (same math, no Pallas). bf16 X/W/Wh streaming in the
    # kernels introduces ~0.5% relative error, so use loose tolerances.
    ref = {}
    for et in canonical_etypes:
        srctype, _, dsttype = et
        w, b = params["_".join(et)]
        adj = adjacency[et]
        deg = jnp.sum(adj, axis=1, keepdims=True)
        a_norm = jnp.where(deg > 0, adj / jnp.maximum(deg, 1.0), 0.0)
        contrib = a_norm @ (feat_dict[srctype] @ w + b)
        ref[dsttype] = contrib if dsttype not in ref else ref[dsttype] + contrib

    for ntype in out:
        assert out[ntype].shape == (n_nodes[ntype], out_size)
        assert jnp.allclose(out[ntype], ref[ntype], atol=3e-2, rtol=3e-2)

    print("KERNEL_OK")
</pallas_src>

<mosaic_0001>
module attributes {stable_mosaic.version = 11 : i64} {
  func.func @_wh_kernel(%arg0: i32, %arg1: memref<128x16xbf16, #tpu.memory_space<vmem>>, %arg2: memref<16x128xbf16, #tpu.memory_space<vmem>>, %arg3: memref<1x128xf32, #tpu.memory_space<vmem>>, %arg4: memref<128x128xbf16, #tpu.memory_space<vmem>>) attributes {dimension_semantics = [#tpu.dimension_semantics<parallel>], iteration_bounds = array<i64: 1>, scalar_prefetch = 0 : i64, scratch_operands = 0 : i64, tpu.core_type = #tpu.core_type<tc>, window_params = [{transform_indices = @transform_0, window_bounds = array<i64: 128, 16>}, {pipeline_mode = #tpu.pipeline_mode<synchronous>, transform_indices = @transform_1, window_bounds = array<i64: 16, 128>}, {pipeline_mode = #tpu.pipeline_mode<synchronous>, transform_indices = @transform_2, window_bounds = array<i64: 1, 128>}, {transform_indices = @transform_3, window_bounds = array<i64: 128, 128>}]} {
    %c0 = arith.constant 0 : index
    %c0_0 = arith.constant 0 : index
    %0 = vector.load %arg1[%c0, %c0_0] : memref<128x16xbf16, #tpu.memory_space<vmem>>, vector<128x16xbf16>
    %c0_1 = arith.constant 0 : index
    %c0_2 = arith.constant 0 : index
    %1 = vector.load %arg2[%c0_1, %c0_2] : memref<16x128xbf16, #tpu.memory_space<vmem>>, vector<16x128xbf16>
    %cst = arith.constant dense<0.000000e+00> : vector<128x128xf32>
    %2 = tpu.matmul %0, %1, %cst {dimension_numbers = #tpu.dot_dimension_numbers<[1], [0], [0], [1], [0, 0, 1, 1], [], []>} : vector<128x16xbf16>, vector<16x128xbf16>, vector<128x128xf32> -> vector<128x128xf32>
    %c0_3 = arith.constant 0 : index
    %c0_4 = arith.constant 0 : index
    %3 = vector.load %arg3[%c0_3, %c0_4] : memref<1x128xf32, #tpu.memory_space<vmem>>, vector<1x128xf32>
    %4 = vector.broadcast %3 : vector<1x128xf32> to vector<128x128xf32>
    %5 = arith.addf %2, %4 : vector<128x128xf32>
    %6 = arith.truncf %5 : vector<128x128xf32> to vector<128x128xbf16>
    %c0_5 = arith.constant 0 : index
    %c0_6 = arith.constant 0 : index
    %7 = vector.load %arg4[%c0_5, %c0_6] : memref<128x128xbf16, #tpu.memory_space<vmem>>, vector<128x128xbf16>
    tpu.vector_store %arg4[%c0_5, %c0_6], %6 {strides = array<i32>} : memref<128x128xbf16, #tpu.memory_space<vmem>>, vector<128x128xbf16>,
    return
  }
  func.func @transform_0(%arg0: i32) -> (i32, i32) {
    %c0_i32 = arith.constant 0 : i32
    %c0_i32_0 = arith.constant 0 : i32
    return %arg0, %c0_i32 : i32, i32
  }
  func.func @transform_1(%arg0: i32) -> (i32, i32) {
    %c0_i32 = arith.constant 0 : i32
    %c0_i32_0 = arith.constant 0 : i32
    %c0_i32_1 = arith.constant 0 : i32
    return %c0_i32, %c0_i32_0 : i32, i32
  }
  func.func @transform_2(%arg0: i32) -> (i32, i32) {
    %c0_i32 = arith.constant 0 : i32
    %c0_i32_0 = arith.constant 0 : i32
    %c0_i32_1 = arith.constant 0 : i32
    return %c0_i32, %c0_i32_0 : i32, i32
  }
  func.func @transform_3(%arg0: i32) -> (i32, i32) {
    %c0_i32 = arith.constant 0 : i32
    %c0_i32_0 = arith.constant 0 : i32
    return %arg0, %c0_i32 : i32, i32
  }
}

</mosaic_0001>

<llo_original>
// kernel: wh_forward.1
$region0: #{wh_forward.1}
  #allocation0 [shape = 'u32[]', space=smem, size = 0x4, offset = 0x4, fixed_abs, tag = 'smem constant byte address 0x4 - core index']
  #allocation1 [shape = 'u32[144,128]{1,0:T(1,128)}', space=vmem, size = 0x12000, scoped, tag = 'internal scratch']
  %s0 = inlined_call_operand.vmem [shape: bf16[128,16], index: 0, kind: input, shape index: {}]
  %s1 = inlined_call_operand.vmem [shape: bf16[16,128], index: 1, kind: input, shape index: {}]
  %s2 = inlined_call_operand.vmem [shape: f32[1,128], index: 2, kind: input, shape index: {}]
  %s3 = inlined_call_operand.hbm [shape: bf16[128,128], index: 3, kind: output, shape index: {}]
  %s4 = sld [smem:[#allocation0]]
  $region22: #{wh_forward.1} parent=0
    _
  %s6 = ssub.s32 1, %s4
  %s7 = scalar_select 0, %s6, %s4
  $region1: #{wh_forward.1} parent=0
    #allocation2 [shape = 'u8[32768]{0}', space=vmem, size = 0x8000, scoped, tag = 'output window, operand 0, single buffered']
    #allocation3 [shape = 's32[1]{0}', space=sflag, size = 0x4, scoped, tag = 'scoped memory for wh_forward.1']
    %8 = vsyncpa [#allocation3], 0
    // Predicated region
    $region2: #{wh_forward.1} parent=1 // pred_check
      _
    $region3: #{wh_forward.1} parent=1 // pred_check_branch
      %10 = sbr.rel (0) target = $region5
    $region4: #{wh_forward.1} parent=1 // pred_region
      _
    $region5: #{wh_forward.1} parent=1 // pred_fallthru
      _
    // Predicated region
    $region6: #{wh_forward.1} parent=1 // pred_check
      _
    $region7: #{wh_forward.1} parent=1 // pred_check_branch
      %12 = sbr.rel (0) target = $region9
    $region8: #{wh_forward.1} parent=1 // pred_region
      _
    $region9: #{wh_forward.1} parent=1 // pred_fallthru
      _
    // Predicated region
    $region10: #{wh_forward.1} parent=1 // pred_check
      _
    $region11: #{wh_forward.1} parent=1 // pred_check_branch
      %14 = sbr.rel (0) target = $region13
    $region12: #{wh_forward.1} parent=1 // pred_region
      _
    $region13: #{wh_forward.1} parent=1 // pred_fallthru
      _
    %v16 = vld [vmem:[%s0] sm:$0xf]
    %v17 = vld [vmem:[%s0 + $0x4] sm:$0xf]
    %v18 = vld [vmem:[%s0 + $0x8] sm:$0xf]
    %v19 = vld [vmem:[%s0 + $0xc] sm:$0xf]
    %v20 = vld [vmem:[%s0 + $0x10] sm:$0xf]
    %v21 = vld [vmem:[%s0 + $0x14] sm:$0xf]
    %v22 = vld [vmem:[%s0 + $0x18] sm:$0xf]
    %v23 = vld [vmem:[%s0 + $0x1c] sm:$0xf]
    %v24 = vld [vmem:[%s0 + $0x20] sm:$0xf]
    %v25 = vld [vmem:[%s0 + $0x24] sm:$0xf]
    %v26 = vld [vmem:[%s0 + $0x28] sm:$0xf]
    %v27 = vld [vmem:[%s0 + $0x2c] sm:$0xf]
    %v28 = vld [vmem:[%s0 + $0x30] sm:$0xf]
    %v29 = vld [vmem:[%s0 + $0x34] sm:$0xf]
    %v30 = vld [vmem:[%s0 + $0x38] sm:$0xf]
    %v31 = vld [vmem:[%s0 + $0x3c] sm:$0xf]
    %v32 = vld [vmem:[%s1] sm:$0xf]
    %v33 = vld [vmem:[%s1 + $0x4] sm:$0xf]
    %v34 = vld [vmem:[%s2] sm:$0x1]
    %v36 = vlaneseq
    %v37 = vshrl.u32 %v36, 7
    %v38 = vsub.s32 0, %v37
    %v39 = vrot.slane %v34, %v38
    %v57 = vunpack.c.l.b16 %v16
    %v58 = vunpack.c.l.b16 %v17
    %v59 = vunpack.c.l.b16 %v18
    %v60 = vunpack.c.l.b16 %v19
    %v61 = vunpack.c.l.b16 %v20
    %v62 = vunpack.c.l.b16 %v21
    %v63 = vunpack.c.l.b16 %v22
    %v64 = vunpack.c.l.b16 %v23
    %v65 = vunpack.c.l.b16 %v24
    %v66 = vunpack.c.l.b16 %v25
    %v67 = vunpack.c.l.b16 %v26
    %v68 = vunpack.c.l.b16 %v27
    %v69 = vunpack.c.l.b16 %v28
    %v70 = vunpack.c.l.b16 %v29
    %v71 = vunpack.c.l.b16 %v30
    %v72 = vunpack.c.l.b16 %v31
    %v73 = vpack.c.b16 %v58, %v57
    %v74 = vpack.c.b16 %v60, %v59
    %v75 = vpack.c.b16 %v62, %v61
    %v76 = vpack.c.b16 %v64, %v63
    %v77 = vpack.c.b16 %v66, %v65
    %v78 = vpack.c.b16 %v68, %v67
    %v79 = vpack.c.b16 %v70, %v69
    %v80 = vpack.c.b16 %v72, %v71
    %v83 = vunpack.c.l.b16 %v32
    %v84 = vunpack.c.l.b16 %v33
    %v85 = vpack.c.b16 %v84, %v83
    %vm87 = vcmask 130048
    %v89 = vsel %vm87, %v73, 0
    %v92 = vsel %vm87, %v74, 0
    %v95 = vsel %vm87, %v75, 0
    %v98 = vsel %vm87, %v76, 0
    %v101 = vsel %vm87, %v77, 0
    %v104 = vsel %vm87, %v78, 0
    %v107 = vsel %vm87, %v79, 0
    %v110 = vsel %vm87, %v80, 0
    %112 = vmatprep.subr.bf16.mxu0 0
    %113 = vmatpush1.bf16.msra.mxu0 %v85
    %114 = vmatprep.subr.bf16.mxu0 0
    %115 = vmatpush1.bf16.msra.mxu0 0
    %116 = vmatprep.subr.bf16.mxu0 0
    %117 = vmatpush1.bf16.msra.mxu0 0
    %118 = vmatprep.subr.bf16.mxu0 0
    %119 = vmatpush1.bf16.msra.mxu0 0
    %120 = vmatprep.subr.bf16.mxu0 0
    %121 = vmatpush1.bf16.msra.mxu0 0
    %122 = vmatprep.subr.bf16.mxu0 0
    %123 = vmatpush1.bf16.msra.mxu0 0
    %124 = vmatprep.subr.bf16.mxu0 0
    %125 = vmatpush1.bf16.msra.mxu0 0
    %126 = vmatprep.subr.bf16.mxu0 0
    %127 = vmatpush1.bf16.msra.mxu0 0
    %128 = vmatprep.subr.bf16.mxu0 0
    %129 = vmatpush1.bf16.msra.mxu0 0
    %130 = vmatprep.subr.bf16.mxu0 0
    %131 = vmatpush1.bf16.msra.mxu0 0
    %132 = vmatprep.subr.bf16.mxu0 0
    %133 = vmatpush1.bf16.msra.mxu0 0
    %134 = vmatprep.subr.bf16.mxu0 0
    %135 = vmatpush1.bf16.msra.mxu0 0
    %136 = vmatprep.subr.bf16.mxu0 0
    %137 = vmatpush1.bf16.msra.mxu0 0
    %138 = vmatprep.subr.bf16.mxu0 0
    %139 = vmatpush1.bf16.msra.mxu0 0
    %140 = vmatprep.subr.bf16.mxu0 0
    %141 = vmatpush1.bf16.msra.mxu0 0
    %142 = vmatprep.subr.bf16.mxu0 0
    %143 = vmatpush1.bf16.msra.mxu0 0
    %144 = vmatprep.mubr.bf16.mxu0 0
    %145 = vmatmul.mubr.bf16.gmra.mrb[0].mxu0 %v89
    %v146 = vpop.f32.mrb[0].mxu0
    %v147 = vadd.f32 %v39, %v146
    %v148 = vpop.f32.mrb[0].mxu0
    %v149 = vpop.f32.mrb[0].mxu0
    %v150 = vadd.f32 %v39, %v149
    %v151 = vpop.f32.mrb[0].mxu0
    %152 = vmatprep.mubr.bf16.mxu0 0
    %153 = vmatmul.mubr.bf16.gmra.mrb[0].mxu0 %v92
    %v154 = vpop.f32.mrb[0].mxu0
    %v155 = vadd.f32 %v39, %v154
    %v156 = vpop.f32.mrb[0].mxu0
    %v157 = vpop.f32.mrb[0].mxu0
    %v158 = vadd.f32 %v39, %v157
    %v159 = vpop.f32.mrb[0].mxu0
    %160 = vmatprep.mubr.bf16.mxu0 0
    %161 = vmatmul.mubr.bf16.gmra.mrb[0].mxu0 %v95
    %v162 = vpop.f32.mrb[0].mxu0
    %v163 = vadd.f32 %v39, %v162
    %v164 = vpop.f32.mrb[0].mxu0
    %v165 = vpop.f32.mrb[0].mxu0
    %v166 = vadd.f32 %v39, %v165
    %v167 = vpop.f32.mrb[0].mxu0
    %168 = vmatprep.mubr.bf16.mxu0 0
    %169 = vmatmul.mubr.bf16.gmra.mrb[0].mxu0 %v98
    %v170 = vpop.f32.mrb[0].mxu0
    %v171 = vadd.f32 %v39, %v170
    %v172 = vpop.f32.mrb[0].mxu0
    %v173 = vpop.f32.mrb[0].mxu0
    %v174 = vadd.f32 %v39, %v173
    %v175 = vpop.f32.mrb[0].mxu0
    %176 = vmatprep.mubr.bf16.mxu0 0
    %177 = vmatmul.mubr.bf16.gmra.mrb[0].mxu0 %v101
    %v178 = vpop.f32.mrb[0].mxu0
    %v179 = vadd.f32 %v39, %v178
    %v180 = vpop.f32.mrb[0].mxu0
    %v181 = vpop.f32.mrb[0].mxu0
    %v182 = vadd.f32 %v39, %v181
    %v183 = vpop.f32.mrb[0].mxu0
    %184 = vmatprep.mubr.bf16.mxu0 0
    %185 = vmatmul.mubr.bf16.gmra.mrb[0].mxu0 %v104
    %v186 = vpop.f32.mrb[0].mxu0
    %v187 = vadd.f32 %v39, %v186
    %v188 = vpop.f32.mrb[0].mxu0
    %v189 = vpop.f32.mrb[0].mxu0
    %v190 = vadd.f32 %v39, %v189
    %v191 = vpop.f32.mrb[0].mxu0
    %192 = vmatprep.mubr.bf16.mxu0 0
    %193 = vmatmul.mubr.bf16.gmra.mrb[0].mxu0 %v107
    %v194 = vpop.f32.mrb[0].mxu0
    %v195 = vadd.f32 %v39, %v194
    %v196 = vpop.f32.mrb[0].mxu0
    %v197 = vpop.f32.mrb[0].mxu0
    %v198 = vadd.f32 %v39, %v197
    %v199 = vpop.f32.mrb[0].mxu0
    %200 = vmatprep.mubr.bf16.mxu0 0
    %201 = vmatmul.mubr.bf16.gmra.mrb[0].mxu0 %v110
    %v202 = vpop.f32.mrb[0].mxu0
    %v203 = vadd.f32 %v39, %v202
    %v204 = vpop.f32.mrb[0].mxu0
    %v205 = vpop.f32.mrb[0].mxu0
    %v206 = vadd.f32 %v39, %v205
    %v207 = vpop.f32.mrb[0].mxu0
    %208 = vdwg.mxu0
    %v209 = vpack.c.bf16 %v150, %v147
    %v210 = vpack.c.bf16 %v158, %v155
    %v211 = vpack.c.bf16 %v166, %v163
    %v212 = vpack.c.bf16 %v174, %v171
    %v213 = vpack.c.bf16 %v182, %v179
    %v214 = vpack.c.bf16 %v190, %v187
    %v215 = vpack.c.bf16 %v198, %v195
    %v216 = vpack.c.bf16 %v206, %v203
    %v225 = vunpack.c.l.b16 %v209
    %v226 = vunpack.c.h.b16 %v209
    %v227 = vunpack.c.l.b16 %v210
    %v228 = vunpack.c.h.b16 %v210
    %v229 = vunpack.c.l.b16 %v211
    %v230 = vunpack.c.h.b16 %v211
    %v231 = vunpack.c.l.b16 %v212
    %v232 = vunpack.c.h.b16 %v212
    %v233 = vunpack.c.l.b16 %v213
    %v234 = vunpack.c.h.b16 %v213
    %v235 = vunpack.c.l.b16 %v214
    %v236 = vunpack.c.h.b16 %v214
    %v237 = vunpack.c.l.b16 %v215
    %v238 = vunpack.c.h.b16 %v215
    %v239 = vunpack.c.l.b16 %v216
    %v240 = vunpack.c.h.b16 %v216
    %v241 = vpack.c.b16 %v225, %v225
    %v242 = vpack.c.b16 %v226, %v226
    %v243 = vpack.c.b16 %v227, %v227
    %v244 = vpack.c.b16 %v228, %v228
    %v245 = vpack.c.b16 %v229, %v229
    %v246 = vpack.c.b16 %v230, %v230
    %v247 = vpack.c.b16 %v231, %v231
    %v248 = vpack.c.b16 %v232, %v232
    %v249 = vpack.c.b16 %v233, %v233
    %v250 = vpack.c.b16 %v234, %v234
    %v251 = vpack.c.b16 %v235, %v235
    %v252 = vpack.c.b16 %v236, %v236
    %v253 = vpack.c.b16 %v237, %v237
    %v254 = vpack.c.b16 %v238, %v238
    %v255 = vpack.c.b16 %v239, %v239
    %v256 = vpack.c.b16 %v240, %v240
    %273 = vst [vmem:[#allocation2] sm:$0xf] %v241
    %274 = vst [vmem:[#allocation2 + $0x4] sm:$0xf] %v242
    %275 = vst [vmem:[#allocation2 + $0x8] sm:$0xf] %v243
    %276 = vst [vmem:[#allocation2 + $0xc] sm:$0xf] %v244
    %277 = vst [vmem:[#allocation2 + $0x10] sm:$0xf] %v245
    %278 = vst [vmem:[#allocation2 + $0x14] sm:$0xf] %v246
    %279 = vst [vmem:[#allocation2 + $0x18] sm:$0xf] %v247
    %280 = vst [vmem:[#allocation2 + $0x1c] sm:$0xf] %v248
    %281 = vst [vmem:[#allocation2 + $0x20] sm:$0xf] %v249
    %282 = vst [vmem:[#allocation2 + $0x24] sm:$0xf] %v250
    %283 = vst [vmem:[#allocation2 + $0x28] sm:$0xf] %v251
    %284 = vst [vmem:[#allocation2 + $0x2c] sm:$0xf] %v252
    %285 = vst [vmem:[#allocation2 + $0x30] sm:$0xf] %v253
    %286 = vst [vmem:[#allocation2 + $0x34] sm:$0xf] %v254
    %287 = vst [vmem:[#allocation2 + $0x38] sm:$0xf] %v255
    %288 = vst [vmem:[#allocation2 + $0x3c] sm:$0xf] %v256
    // Predicated region
    $region14: #{wh_forward.1} parent=1 // pred_check
      _
    $region15: #{wh_forward.1} parent=1 // pred_check_branch
      %290 = sbr.rel (0) target = $region17
    $region16: #{wh_forward.1} parent=1 // pred_region
      %s292 = ssub.s32 1024, 1024
      %293 = vsyncadd [#allocation3], %s292
      %s294 = sshll.u32 [#allocation2], 4
      %s295 = int_to_ptr.vmem [resolvable:$true] %s294
      %300 = dma.vmem_to_hbm [thread:$0]  %s295, 1024, %s3, [#allocation3], 64, 64, 4
    $region17: #{wh_forward.1} parent=1 // pred_fallthru
      _
    // Predicated region
    $region18: #{wh_forward.1} parent=1 // pred_check
      _
    $region19: #{wh_forward.1} parent=1 // pred_check_branch
      %302 = sbr.rel (0) target = $region21
    $region20: #{wh_forward.1} parent=1 // pred_region
      %303 = dma.done [#allocation3], 1024
    $region21: #{wh_forward.1} parent=1 // pred_fallthru
      _
    %304 = vsyncpa [#allocation3], 1

</llo_original>
